<compile_context>
chip_gen: v7x
topology: tpu7x:2x2x1
jax: 0.10.0
libtpu: 0.0.40
codegen_flags: <defaults>
</compile_context>

<pallas_src>
import jax
import jax.numpy as jnp
from jax.experimental import pallas as pl
from jax.experimental.pallas import tpu as pltpu


F_IN = 310    # raw CFE input width (read un-padded straight from HBM)


def _round_up(x, m):
    return (x + m - 1) // m * m


def _leaky_relu(x, slope=0.01):
    # max(x, slope*x) == LeakyReLU for 0 < slope < 1; one VALU op cheaper than
    # cmp+mul+select.
    return jnp.maximum(x, slope * x)


# ----------------------------------------------------------------------------
# Fused kernel: CFE MLP + all S DSFE heads + block-diagonal classifiers
# ----------------------------------------------------------------------------
def fused_forward_kernel(x_ref, w1_ref, b1_ref, w2_ref, b2_ref, w3_ref, b3_ref,
                         wd_ref, bd_ref, wc_ref, bc_ref, o_ref):
    """One batch tile: (T, 310) -> CFE -> (T, 64) -> all S heads -> (T, Cpad)."""
    # bf16 operands on the MXU, f32 accumulation throughout.
    x = x_ref[...].astype(jnp.bfloat16)                                     # (T, 310)

    # Shared CFE: 310 -> 256 -> 128 -> 64, LeakyReLU(0.01) after each.
    h = jnp.dot(x, w1_ref[...], preferred_element_type=jnp.float32)
    h = _leaky_relu(h + b1_ref[...])                                        # (T, 256)
    h = jnp.dot(h.astype(jnp.bfloat16), w2_ref[...],
                preferred_element_type=jnp.float32)
    h = _leaky_relu(h + b2_ref[...])                                        # (T, 128)
    h = jnp.dot(h.astype(jnp.bfloat16), w3_ref[...],
                preferred_element_type=jnp.float32)
    feat = _leaky_relu(h + b3_ref[...])                                     # (T, 64)

    # All S DSFE heads at once: (T, 64) @ (64, S*32) + ReLU.
    d = jnp.dot(feat.astype(jnp.bfloat16), wd_ref[...],
                preferred_element_type=jnp.float32)                         # (T, S*32)
    d = jnp.maximum(d + bd_ref[...], 0.0)

    # Block-diagonal classifier slab: (T, S*32) @ (S*32, Cpad), lane-dense store.
    p = jnp.dot(d.astype(jnp.bfloat16), wc_ref[...],
                preferred_element_type=jnp.float32)                         # (T, Cpad)
    o_ref[...] = (p + bc_ref[...]).astype(o_ref.dtype)


# ----------------------------------------------------------------------------
# Wrapper
# ----------------------------------------------------------------------------
def _choose_tile_n(n, tile_n_max):
    """Pick a batch tile: multiple of 8, capped so the grid has >= 2 steps
    whenever possible (v7x dual-TensorCore), or the full batch when n <= 8."""
    if n <= 8:
        return max(n, 1)
    half = _round_up((n + 1) // 2, 8)          # >= 2 grid steps
    return max(8, min(_round_up(tile_n_max, 8), half))


def msmdaer_forward(x, fused, number_of_source=None, *, tile_n=1024,
                    out_dtype=jnp.bfloat16):
    """Inference path of MSMDAERNet.forward: list of per-source (N, C) preds."""
    n = x.shape[0]
    S, C = fused["S"], fused["C"]
    if number_of_source is None:
        number_of_source = S
    assert number_of_source == S, "fused params were built for a different S"

    w1, b1 = fused["w1"], fused["b1"]
    w2, b2 = fused["w2"], fused["b2"]
    w3, b3 = fused["w3"], fused["b3"]
    wd, bd = fused["wd"], fused["bd"]
    wc, bc = fused["wc"], fused["bc"]
    c_pad = wc.shape[1]

    tile = _choose_tile_n(n, tile_n)
    grid = pl.cdiv(n, tile)   # partial last block: OOB rows dropped on writeback

    def const(arr):
        # Whole-array block, same block index every grid step -> stays resident.
        nd = arr.ndim
        return pl.BlockSpec(arr.shape, lambda i: (0,) * nd)

    flops = 2 * n * (F_IN * 256 + 256 * 128 + 128 * 64
                     + 64 * S * 32 + S * 32 * c_pad)
    weight_bytes = sum(int(a.size) * a.dtype.itemsize
                       for a in (w1, b1, w2, b2, w3, b3, wd, bd, wc, bc))
    bytes_accessed = (n * (F_IN * x.dtype.itemsize
                           + c_pad * jnp.dtype(out_dtype).itemsize)
                      + weight_bytes)

    out = pl.pallas_call(
        fused_forward_kernel,
        out_shape=jax.ShapeDtypeStruct((n, c_pad), out_dtype),
        grid_spec=pltpu.PrefetchScalarGridSpec(
            num_scalar_prefetch=0,
            grid=(grid,),
            in_specs=[
                # x read as-is: no HBM-side pad, last dim == full array dim.
                pl.BlockSpec((tile, F_IN), lambda i: (i, 0)),
                const(w1), const(b1),
                const(w2), const(b2),
                const(w3), const(b3),
                const(wd), const(bd),
                const(wc), const(bc),
            ],
            out_specs=pl.BlockSpec((tile, c_pad), lambda i: (i, 0)),
        ),
        compiler_params=pltpu.CompilerParams(
            dimension_semantics=("parallel",),
            vmem_limit_bytes=32 * 1024 * 1024),
        cost_estimate=pl.CostEstimate(flops=int(flops), transcendentals=0,
                                      bytes_accessed=int(bytes_accessed)),
    )(x, w1, b1, w2, b2, w3, b3, wd, bd, wc, bc)

    # One slice + reshape of the lane-dense slab, then cheap per-source views.
    pred = out[:, :S * C].reshape(n, S, C)
    return [pred[:, i, :] for i in range(S)]


# ----------------------------------------------------------------------------
# Parameter init (PyTorch nn.Linear-style uniform) and weight fusion
# ----------------------------------------------------------------------------
def _linear_init(key, fan_in, fan_out):
    kw, kb = jax.random.split(key)
    bound = 1.0 / jnp.sqrt(float(fan_in))
    w = jax.random.uniform(kw, (fan_in, fan_out), jnp.float32, -bound, bound)
    b = jax.random.uniform(kb, (1, fan_out), jnp.float32, -bound, bound)
    return w, b


def init_params(key, number_of_source=15, number_of_category=4):
    keys = jax.random.split(key, 5)
    w1, b1 = _linear_init(keys[0], 310, 256)
    w2, b2 = _linear_init(keys[1], 256, 128)
    w3, b3 = _linear_init(keys[2], 128, 64)

    dsfe_keys = jax.random.split(keys[3], number_of_source)
    dsc_keys = jax.random.split(keys[4], number_of_source)
    wd_list, bd_list, wc_list, bc_list = [], [], [], []
    for i in range(number_of_source):
        wd, bd = _linear_init(dsfe_keys[i], 64, 32)
        wc, bc = _linear_init(dsc_keys[i], 32, number_of_category)
        wd_list.append(wd); bd_list.append(bd)
        wc_list.append(wc); bc_list.append(bc)

    return {
        "w1": w1, "b1": b1, "w2": w2, "b2": b2, "w3": w3, "b3": b3,
        "wd": jnp.stack(wd_list),          # (S, 64, 32)
        "bd": jnp.stack(bd_list),          # (S, 1, 32)
        "wc": jnp.stack(wc_list),          # (S, 32, C)
        "bc": jnp.stack(bc_list),          # (S, 1, C)
    }


def fuse_params(params):
    """Build the fused / padded weight slabs consumed by the Pallas kernel.

    Done ONCE (outside the hot path):
      * All matmul weights cast to bf16 (MXU-native); biases stay f32.
      * DSFE weights concatenated along columns -> (64, S*32).
      * Classifiers packed block-diagonally -> (S*32, pad128(S*C)).
    """
    S, _, C = params["wc"].shape
    c_out = S * C
    c_pad = _round_up(max(c_out, 128), 128)

    wd = jnp.transpose(params["wd"], (1, 0, 2)).reshape(64, S * 32)      # (64, S*32)
    bd = params["bd"].reshape(1, S * 32)                                 # (1, S*32)
    wc_bd = jax.scipy.linalg.block_diag(                                 # (S*32, S*C)
        *[params["wc"][i] for i in range(S)])
    wc_bd = jnp.pad(wc_bd, ((0, 0), (0, c_pad - c_out)))                 # (S*32, Cpad)
    bc = jnp.pad(params["bc"].reshape(1, c_out), ((0, 0), (0, c_pad - c_out)))

    return {
        "w1": params["w1"].astype(jnp.bfloat16), "b1": params["b1"],
        "w2": params["w2"].astype(jnp.bfloat16), "b2": params["b2"],
        "w3": params["w3"].astype(jnp.bfloat16), "b3": params["b3"],
        "wd": wd.astype(jnp.bfloat16), "bd": bd,
        "wc": wc_bd.astype(jnp.bfloat16), "bc": bc,
        "C": C, "S": S,
    }


# ----------------------------------------------------------------------------
# Pure-JAX reference (un-fused, f32) for a silent correctness check
# ----------------------------------------------------------------------------
def reference_forward(x, params, number_of_source):
    def lrelu(v):
        return jnp.where(v >= 0, v, 0.01 * v)
    h = lrelu(x @ params["w1"] + params["b1"])
    h = lrelu(h @ params["w2"] + params["b2"])
    h = lrelu(h @ params["w3"] + params["b3"])
    preds = []
    for i in range(number_of_source):
        f = jnp.maximum(h @ params["wd"][i] + params["bd"][i], 0.0)
        preds.append(f @ params["wc"][i] + params["bc"][i])
    return preds


if __name__ == "__main__":
    def run_case(key, batch, S, C):
        kx, kp = jax.random.split(key)
        x = jax.random.normal(kx, (batch, F_IN), jnp.float32)
        params = init_params(kp, S, C)
        fused = fuse_params(params)

        preds = msmdaer_forward(x, fused, S)
        preds = [jax.block_until_ready(p) for p in preds]

        ref = reference_forward(x, params, S)
        for p, r in zip(preds, ref):
            assert p.shape == (batch, C)
            pf = p.astype(jnp.float32)
            # bf16 operands (f32 accumulation) vs. f32 reference -> loose tol.
            assert jnp.allclose(pf, r, atol=5e-2, rtol=5e-2), \
                float(jnp.max(jnp.abs(pf - r)))

    key = jax.random.PRNGKey(0)
    k1, k2 = jax.random.split(key)
    run_case(k1, batch=16, S=3, C=4)    # small demo shapes (grid of 2)
    run_case(k2, batch=64, S=15, C=4)   # production head count: wd (64,480), c_pad=128
    print("KERNEL_OK")
</pallas_src>

<mosaic_0001>
module attributes {stable_mosaic.version = 11 : i64} {
  func.func @fused_forward_kernel(%arg0: i32, %arg1: memref<8x310xf32, #tpu.memory_space<vmem>>, %arg2: memref<310x256xbf16, #tpu.memory_space<vmem>>, %arg3: memref<1x256xf32, #tpu.memory_space<vmem>>, %arg4: memref<256x128xbf16, #tpu.memory_space<vmem>>, %arg5: memref<1x128xf32, #tpu.memory_space<vmem>>, %arg6: memref<128x64xbf16, #tpu.memory_space<vmem>>, %arg7: memref<1x64xf32, #tpu.memory_space<vmem>>, %arg8: memref<64x96xbf16, #tpu.memory_space<vmem>>, %arg9: memref<1x96xf32, #tpu.memory_space<vmem>>, %arg10: memref<96x128xbf16, #tpu.memory_space<vmem>>, %arg11: memref<1x128xf32, #tpu.memory_space<vmem>>, %arg12: memref<8x128xbf16, #tpu.memory_space<vmem>>) attributes {dimension_semantics = [#tpu.dimension_semantics<parallel>], iteration_bounds = array<i64: 2>, scalar_prefetch = 0 : i64, scratch_operands = 0 : i64, tpu.core_type = #tpu.core_type<tc>, window_params = [{transform_indices = @transform_0, window_bounds = array<i64: 8, 310>}, {pipeline_mode = #tpu.pipeline_mode<synchronous>, transform_indices = @transform_1, window_bounds = array<i64: 310, 256>}, {pipeline_mode = #tpu.pipeline_mode<synchronous>, transform_indices = @transform_2, window_bounds = array<i64: 1, 256>}, {pipeline_mode = #tpu.pipeline_mode<synchronous>, transform_indices = @transform_3, window_bounds = array<i64: 256, 128>}, {pipeline_mode = #tpu.pipeline_mode<synchronous>, transform_indices = @transform_4, window_bounds = array<i64: 1, 128>}, {pipeline_mode = #tpu.pipeline_mode<synchronous>, transform_indices = @transform_5, window_bounds = array<i64: 128, 64>}, {pipeline_mode = #tpu.pipeline_mode<synchronous>, transform_indices = @transform_6, window_bounds = array<i64: 1, 64>}, {pipeline_mode = #tpu.pipeline_mode<synchronous>, transform_indices = @transform_7, window_bounds = array<i64: 64, 96>}, {pipeline_mode = #tpu.pipeline_mode<synchronous>, transform_indices = @transform_8, window_bounds = array<i64: 1, 96>}, {pipeline_mode = #tpu.pipeline_mode<synchronous>, transform_indices = @transform_9, window_bounds = array<i64: 96, 128>}, {pipeline_mode = #tpu.pipeline_mode<synchronous>, transform_indices = @transform_10, window_bounds = array<i64: 1, 128>}, {transform_indices = @transform_11, window_bounds = array<i64: 8, 128>}]} {
    %c0 = arith.constant 0 : index
    %c0_0 = arith.constant 0 : index
    %0 = vector.load %arg1[%c0, %c0_0] : memref<8x310xf32, #tpu.memory_space<vmem>>, vector<8x310xf32>
    %1 = arith.truncf %0 : vector<8x310xf32> to vector<8x310xbf16>
    %c0_1 = arith.constant 0 : index
    %c0_2 = arith.constant 0 : index
    %2 = vector.load %arg2[%c0_1, %c0_2] : memref<310x256xbf16, #tpu.memory_space<vmem>>, vector<310x256xbf16>
    %cst = arith.constant dense<0.000000e+00> : vector<8x256xf32>
    %3 = tpu.matmul %1, %2, %cst {dimension_numbers = #tpu.dot_dimension_numbers<[1], [0], [0], [1], [0, 0, 1, 1], [], []>} : vector<8x310xbf16>, vector<310x256xbf16>, vector<8x256xf32> -> vector<8x256xf32>
    %c0_3 = arith.constant 0 : index
    %c0_4 = arith.constant 0 : index
    %4 = vector.load %arg3[%c0_3, %c0_4] : memref<1x256xf32, #tpu.memory_space<vmem>>, vector<1x256xf32>
    %5 = vector.broadcast %4 : vector<1x256xf32> to vector<8x256xf32>
    %6 = arith.addf %3, %5 : vector<8x256xf32>
    %cst_5 = arith.constant 0.00999999977 : f32
    %7 = vector.broadcast %cst_5 : f32 to vector<8x256xf32>
    %8 = arith.mulf %7, %6 : vector<8x256xf32>
    %9 = arith.maximumf %6, %8 : vector<8x256xf32>
    %10 = arith.truncf %9 : vector<8x256xf32> to vector<8x256xbf16>
    %c0_6 = arith.constant 0 : index
    %c0_7 = arith.constant 0 : index
    %11 = vector.load %arg4[%c0_6, %c0_7] : memref<256x128xbf16, #tpu.memory_space<vmem>>, vector<256x128xbf16>
    %cst_8 = arith.constant dense<0.000000e+00> : vector<8x128xf32>
    %12 = tpu.matmul %10, %11, %cst_8 {dimension_numbers = #tpu.dot_dimension_numbers<[1], [0], [0], [1], [0, 0, 1, 1], [], []>} : vector<8x256xbf16>, vector<256x128xbf16>, vector<8x128xf32> -> vector<8x128xf32>
    %c0_9 = arith.constant 0 : index
    %c0_10 = arith.constant 0 : index
    %13 = vector.load %arg5[%c0_9, %c0_10] : memref<1x128xf32, #tpu.memory_space<vmem>>, vector<1x128xf32>
    %14 = vector.broadcast %13 : vector<1x128xf32> to vector<8x128xf32>
    %15 = arith.addf %12, %14 : vector<8x128xf32>
    %cst_11 = arith.constant 0.00999999977 : f32
    %16 = vector.broadcast %cst_11 : f32 to vector<8x128xf32>
    %17 = arith.mulf %16, %15 : vector<8x128xf32>
    %18 = arith.maximumf %15, %17 : vector<8x128xf32>
    %19 = arith.truncf %18 : vector<8x128xf32> to vector<8x128xbf16>
    %c0_12 = arith.constant 0 : index
    %c0_13 = arith.constant 0 : index
    %20 = vector.load %arg6[%c0_12, %c0_13] : memref<128x64xbf16, #tpu.memory_space<vmem>>, vector<128x64xbf16>
    %cst_14 = arith.constant dense<0.000000e+00> : vector<8x64xf32>
    %21 = tpu.matmul %19, %20, %cst_14 {dimension_numbers = #tpu.dot_dimension_numbers<[1], [0], [0], [1], [0, 0, 1, 1], [], []>} : vector<8x128xbf16>, vector<128x64xbf16>, vector<8x64xf32> -> vector<8x64xf32>
    %c0_15 = arith.constant 0 : index
    %c0_16 = arith.constant 0 : index
    %22 = vector.load %arg7[%c0_15, %c0_16] : memref<1x64xf32, #tpu.memory_space<vmem>>, vector<1x64xf32>
    %23 = vector.broadcast %22 : vector<1x64xf32> to vector<8x64xf32>
    %24 = arith.addf %21, %23 : vector<8x64xf32>
    %cst_17 = arith.constant 0.00999999977 : f32
    %25 = vector.broadcast %cst_17 : f32 to vector<8x64xf32>
    %26 = arith.mulf %25, %24 : vector<8x64xf32>
    %27 = arith.maximumf %24, %26 : vector<8x64xf32>
    %28 = arith.truncf %27 : vector<8x64xf32> to vector<8x64xbf16>
    %c0_18 = arith.constant 0 : index
    %c0_19 = arith.constant 0 : index
    %29 = vector.load %arg8[%c0_18, %c0_19] : memref<64x96xbf16, #tpu.memory_space<vmem>>, vector<64x96xbf16>
    %cst_20 = arith.constant dense<0.000000e+00> : vector<8x96xf32>
    %30 = tpu.matmul %28, %29, %cst_20 {dimension_numbers = #tpu.dot_dimension_numbers<[1], [0], [0], [1], [0, 0, 1, 1], [], []>} : vector<8x64xbf16>, vector<64x96xbf16>, vector<8x96xf32> -> vector<8x96xf32>
    %c0_21 = arith.constant 0 : index
    %c0_22 = arith.constant 0 : index
    %31 = vector.load %arg9[%c0_21, %c0_22] : memref<1x96xf32, #tpu.memory_space<vmem>>, vector<1x96xf32>
    %32 = vector.broadcast %31 : vector<1x96xf32> to vector<8x96xf32>
    %33 = arith.addf %30, %32 : vector<8x96xf32>
    %cst_23 = arith.constant 0.000000e+00 : f32
    %34 = vector.broadcast %cst_23 : f32 to vector<8x96xf32>
    %35 = arith.maximumf %33, %34 : vector<8x96xf32>
    %36 = arith.truncf %35 : vector<8x96xf32> to vector<8x96xbf16>
    %c0_24 = arith.constant 0 : index
    %c0_25 = arith.constant 0 : index
    %37 = vector.load %arg10[%c0_24, %c0_25] : memref<96x128xbf16, #tpu.memory_space<vmem>>, vector<96x128xbf16>
    %cst_26 = arith.constant dense<0.000000e+00> : vector<8x128xf32>
    %38 = tpu.matmul %36, %37, %cst_26 {dimension_numbers = #tpu.dot_dimension_numbers<[1], [0], [0], [1], [0, 0, 1, 1], [], []>} : vector<8x96xbf16>, vector<96x128xbf16>, vector<8x128xf32> -> vector<8x128xf32>
    %c0_27 = arith.constant 0 : index
    %c0_28 = arith.constant 0 : index
    %39 = vector.load %arg11[%c0_27, %c0_28] : memref<1x128xf32, #tpu.memory_space<vmem>>, vector<1x128xf32>
    %40 = vector.broadcast %39 : vector<1x128xf32> to vector<8x128xf32>
    %41 = arith.addf %38, %40 : vector<8x128xf32>
    %42 = arith.truncf %41 : vector<8x128xf32> to vector<8x128xbf16>
    %c0_29 = arith.constant 0 : index
    %c0_30 = arith.constant 0 : index
    %43 = vector.load %arg12[%c0_29, %c0_30] : memref<8x128xbf16, #tpu.memory_space<vmem>>, vector<8x128xbf16>
    tpu.vector_store %arg12[%c0_29, %c0_30], %42 {strides = array<i32>} : memref<8x128xbf16, #tpu.memory_space<vmem>>, vector<8x128xbf16>,
    return
  }
  func.func @transform_0(%arg0: i32) -> (i32, i32) {
    %c0_i32 = arith.constant 0 : i32
    %c0_i32_0 = arith.constant 0 : i32
    return %arg0, %c0_i32 : i32, i32
  }
  func.func @transform_1(%arg0: i32) -> (i32, i32) {
    %c0_i32 = arith.constant 0 : i32
    %c0_i32_0 = arith.constant 0 : i32
    %c0_i32_1 = arith.constant 0 : i32
    return %c0_i32, %c0_i32_0 : i32, i32
  }
  func.func @transform_2(%arg0: i32) -> (i32, i32) {
    %c0_i32 = arith.constant 0 : i32
    %c0_i32_0 = arith.constant 0 : i32
    %c0_i32_1 = arith.constant 0 : i32
    return %c0_i32, %c0_i32_0 : i32, i32
  }
  func.func @transform_3(%arg0: i32) -> (i32, i32) {
    %c0_i32 = arith.constant 0 : i32
    %c0_i32_0 = arith.constant 0 : i32
    %c0_i32_1 = arith.constant 0 : i32
    return %c0_i32, %c0_i32_0 : i32, i32
  }
  func.func @transform_4(%arg0: i32) -> (i32, i32) {
    %c0_i32 = arith.constant 0 : i32
    %c0_i32_0 = arith.constant 0 : i32
    %c0_i32_1 = arith.constant 0 : i32
    return %c0_i32, %c0_i32_0 : i32, i32
  }
  func.func @transform_5(%arg0: i32) -> (i32, i32) {
    %c0_i32 = arith.constant 0 : i32
    %c0_i32_0 = arith.constant 0 : i32
    %c0_i32_1 = arith.constant 0 : i32
    return %c0_i32, %c0_i32_0 : i32, i32
  }
  func.func @transform_6(%arg0: i32) -> (i32, i32) {
    %c0_i32 = arith.constant 0 : i32
    %c0_i32_0 = arith.constant 0 : i32
    %c0_i32_1 = arith.constant 0 : i32
    return %c0_i32, %c0_i32_0 : i32, i32
  }
  func.func @transform_7(%arg0: i32) -> (i32, i32) {
    %c0_i32 = arith.constant 0 : i32
    %c0_i32_0 = arith.constant 0 : i32
    %c0_i32_1 = arith.constant 0 : i32
    return %c0_i32, %c0_i32_0 : i32, i32
  }
  func.func @transform_8(%arg0: i32) -> (i32, i32) {
    %c0_i32 = arith.constant 0 : i32
    %c0_i32_0 = arith.constant 0 : i32
    %c0_i32_1 = arith.constant 0 : i32
    return %c0_i32, %c0_i32_0 : i32, i32
  }
  func.func @transform_9(%arg0: i32) -> (i32, i32) {
    %c0_i32 = arith.constant 0 : i32
    %c0_i32_0 = arith.constant 0 : i32
    %c0_i32_1 = arith.constant 0 : i32
    return %c0_i32, %c0_i32_0 : i32, i32
  }
  func.func @transform_10(%arg0: i32) -> (i32, i32) {
    %c0_i32 = arith.constant 0 : i32
    %c0_i32_0 = arith.constant 0 : i32
    %c0_i32_1 = arith.constant 0 : i32
    return %c0_i32, %c0_i32_0 : i32, i32
  }
  func.func @transform_11(%arg0: i32) -> (i32, i32) {
    %c0_i32 = arith.constant 0 : i32
    %c0_i32_0 = arith.constant 0 : i32
    return %arg0, %c0_i32 : i32, i32
  }
}

</mosaic_0001>

<llo_original>
// kernel: tpu_custom_call.1
$region0: #{tpu_custom_call.1}
  #allocation0 [shape = 'u32[]', space=smem, size = 0x4, offset = 0x4, fixed_abs, tag = 'smem constant byte address 0x4 - core index']
  #allocation1 [shape = 'u32[144,128]{1,0:T(1,128)}', space=vmem, size = 0x12000, scoped, tag = 'internal scratch']
  %s0 = inlined_call_operand.vmem [shape: f32[16,310], index: 0, kind: input, shape index: {}]
  %s1 = inlined_call_operand.hbm [shape: bf16[310,256], index: 1, kind: input, shape index: {}]
  %s2 = inlined_call_operand.vmem [shape: f32[1,256], index: 2, kind: input, shape index: {}]
  %s3 = inlined_call_operand.hbm [shape: bf16[256,128], index: 3, kind: input, shape index: {}]
  %s4 = inlined_call_operand.vmem [shape: f32[1,128], index: 4, kind: input, shape index: {}]
  %s5 = inlined_call_operand.vmem [shape: bf16[128,64], index: 5, kind: input, shape index: {}]
  %s6 = inlined_call_operand.vmem [shape: f32[1,64], index: 6, kind: input, shape index: {}]
  %s7 = inlined_call_operand.hbm [shape: bf16[64,96], index: 7, kind: input, shape index: {}]
  %s8 = inlined_call_operand.vmem [shape: f32[1,96], index: 8, kind: input, shape index: {}]
  %s9 = inlined_call_operand.vmem [shape: bf16[96,128], index: 9, kind: input, shape index: {}]
  %s10 = inlined_call_operand.vmem [shape: f32[1,128], index: 10, kind: input, shape index: {}]
  %s11 = inlined_call_operand.hbm [shape: bf16[16,128], index: 11, kind: output, shape index: {}]
  %s12 = sld [smem:[#allocation0]]
  $region89: #{tpu_custom_call.1} parent=0
    _
  %s14 = ssub.s32 1, %s12
  %s15 = scalar_select 0, %s14, %s12
  $region1: #{tpu_custom_call.1} parent=0
    #allocation2 [shape = 'u8[159744]{0}', space=vmem, size = 0x27000, scoped, tag = 'input window, operand 1, single buffered']
    #allocation3 [shape = 's32[2]{0}', space=sflag, size = 0x8, scoped, tag = 'scoped memory for tpu_custom_call.1']
    #allocation4 [shape = 's32[2]{0}', space=sflag, size = 0x8, scoped, tag = 'scoped memory for tpu_custom_call.1']
    #allocation5 [shape = 'u8[65536]{0}', space=vmem, size = 0x10000, scoped, tag = 'input window, operand 3, single buffered']
    #allocation6 [shape = 's32[1]{0}', space=sflag, size = 0x4, scoped, tag = 'scoped memory for tpu_custom_call.1']
    #allocation7 [shape = 'u8[16384]{0}', space=vmem, size = 0x4000, scoped, tag = 'input window, operand 7, single buffered']
    #allocation8 [shape = 'u8[4096]{0}', space=vmem, size = 0x1000, scoped, tag = 'output window, operand 0']
    %16 = vsyncpa [#allocation3], 0
    %17 = vsyncpa [#allocation6], 0
    %18 = vsyncpa [#allocation4], 0
    %s19 = scalar_lea.sflag [#allocation4], 1
    %20 = vsyncpa %s19, 0
    loop: start=0, step=1, limit=4
    $region2: #{tpu_custom_call.1} parent=1 // loop_pre_header
      _
    $region3: #{tpu_custom_call.1} parent=1 // loop_header
      %s22 = sphi 0, %s26
      %p23 = scmp.ge.s32.totalorder %s22, 4
      %s32 = sphi 0, %s34
      %s35 = sphi 0, %s32
      %s36 = sphi 0, %s35
      %s52 = sphi 0, %s36
      %s56 = sphi 0, %s56
      %s58 = sphi 0, %s56
      %s59 = sphi 0, %s58
      %s73 = sphi 0, %s59
      %s77 = sphi 0, %s77
      %s79 = sphi 0, %s77
      %s80 = sphi 0, %s79
      %s94 = sphi 0, %s80
      %s98 = sphi 0, %s98
      %s100 = sphi 0, %s98
      %s101 = sphi 0, %s100
      %s115 = sphi 0, %s101
      %s119 = sphi 0, %s119
      %s121 = sphi 0, %s119
      %s122 = sphi 0, %s121
      %s136 = sphi 0, %s122
      %s140 = sphi 0, %s140
      %s142 = sphi 0, %s140
      %s143 = sphi 0, %s142
      %s157 = sphi 0, %s143
      %s161 = sphi 0, %s161
      %s163 = sphi 0, %s161
      %s164 = sphi 0, %s163
      %s178 = sphi 0, %s164
      %s182 = sphi 0, %s182
      %s184 = sphi 0, %s182
      %s185 = sphi 0, %s184
      %s199 = sphi 0, %s185
      %s203 = sphi 0, %s203
      %s205 = sphi 0, %s203
      %s206 = sphi 0, %s205
      %s220 = sphi 0, %s206
      %s224 = sphi 0, %s224
      %s226 = sphi 0, %s224
      %s227 = sphi 0, %s226
      %s241 = sphi 0, %s227
      %s245 = sphi 0, %s245
      %s247 = sphi 0, %s245
      %s248 = sphi 0, %s247
      %s262 = sphi 0, %s248
      %s268 = sphi 0, %s270
      %s271 = sphi 0, %s268
      %s272 = sphi 0, %s271
      %s288 = sphi 0, %s272
    $region4: #{tpu_custom_call.1} parent=1 // loop_header_branch
      %25 = sbr.rel (%p23) target = $region8
    $region5: #{tpu_custom_call.1} parent=1 // loop_body
      %s27 = ssub.s32 %s22, 1
      %s28 = ssub.s32 %s22, 2
      %s29 = sadd.s32 %s22, 1
      %s30 = ssub.s32 %s22, %s29
      %p31 = scmp.eq.s32.totalorder %s30, 0
      %s33 = sadd.s32 %s32, 1
      %s34 = scalar_select %p31, %s32, %s33
      %p37 = pneg %p31
      %p38 = scmp.eq.s32.totalorder %s22, 1
      %p39 = por %p37, %p38
      %p40 = scmp.ne.s32.totalorder %s32, %s35
      %p41 = scmp.eq.s32.totalorder %s22, 0
      %p42 = por %p40, %p41
      %p43 = scmp.ne.s32.totalorder %s32, %s35
      %p44 = scmp.eq.s32.totalorder %s27, 1
      %p45 = por %p43, %p44
      %p46 = scmp.ne.s32.totalorder %s35, %s36
      %p47 = scmp.eq.s32.totalorder %s27, 0
      %p48 = por %p46, %p47
      %p49 = scmp.ne.s32.totalorder %s35, %s36
      %p50 = scmp.eq.s32.totalorder %s28, 1
      %p51 = por %p49, %p50
      %p53 = scmp.ne.s32.totalorder %s36, %s52
      %p54 = scmp.eq.s32.totalorder %s28, 0
      %p55 = por %p53, %p54
      %s57 = sadd.s32 %s56, 1
      %p60 = scmp.eq.s32.totalorder %s22, 1
      %p61 = scmp.ne.s32.totalorder %s56, %s58
      %p62 = scmp.eq.s32.totalorder %s22, 0
      %p63 = por %p61, %p62
      %p64 = scmp.ne.s32.totalorder %s56, %s58
      %p65 = scmp.eq.s32.totalorder %s27, 1
      %p66 = por %p64, %p65
      %p67 = scmp.ne.s32.totalorder %s58, %s59
      %p68 = scmp.eq.s32.totalorder %s27, 0
      %p69 = por %p67, %p68
      %p70 = scmp.ne.s32.totalorder %s58, %s59
      %p71 = scmp.eq.s32.totalorder %s28, 1
      %p72 = por %p70, %p71
      %p74 = scmp.ne.s32.totalorder %s59, %s73
      %p75 = scmp.eq.s32.totalorder %s28, 0
      %p76 = por %p74, %p75
      %s78 = sadd.s32 %s77, 1
      %p81 = scmp.eq.s32.totalorder %s22, 1
      %p82 = scmp.ne.s32.totalorder %s77, %s79
      %p83 = scmp.eq.s32.totalorder %s22, 0
      %p84 = por %p82, %p83
      %p85 = scmp.ne.s32.totalorder %s77, %s79
      %p86 = scmp.eq.s32.totalorder %s27, 1
      %p87 = por %p85, %p86
      %p88 = scmp.ne.s32.totalorder %s79, %s80
      %p89 = scmp.eq.s32.totalorder %s27, 0
      %p90 = por %p88, %p89
      %p91 = scmp.ne.s32.totalorder %s79, %s80
      %p92 = scmp.eq.s32.totalorder %s28, 1
      %p93 = por %p91, %p92
      %p95 = scmp.ne.s32.totalorder %s80, %s94
      %p96 = scmp.eq.s32.totalorder %s28, 0
      %p97 = por %p95, %p96
      %s99 = sadd.s32 %s98, 1
      %p102 = scmp.eq.s32.totalorder %s22, 1
      %p103 = scmp.ne.s32.totalorder %s98, %s100
      %p104 = scmp.eq.s32.totalorder %s22, 0
      %p105 = por %p103, %p104
      %p106 = scmp.ne.s32.totalorder %s98, %s100
      %p107 = scmp.eq.s32.totalorder %s27, 1
      %p108 = por %p106, %p107
      %p109 = scmp.ne.s32.totalorder %s100, %s101
      %p110 = scmp.eq.s32.totalorder %s27, 0
      %p111 = por %p109, %p110
      %p112 = scmp.ne.s32.totalorder %s100, %s101
      %p113 = scmp.eq.s32.totalorder %s28, 1
      %p114 = por %p112, %p113
      %p116 = scmp.ne.s32.totalorder %s101, %s115
      %p117 = scmp.eq.s32.totalorder %s28, 0
      %p118 = por %p116, %p117
      %s120 = sadd.s32 %s119, 1
      %p123 = scmp.eq.s32.totalorder %s22, 1
      %p124 = scmp.ne.s32.totalorder %s119, %s121
      %p125 = scmp.eq.s32.totalorder %s22, 0
      %p126 = por %p124, %p125
      %p127 = scmp.ne.s32.totalorder %s119, %s121
      %p128 = scmp.eq.s32.totalorder %s27, 1
      %p129 = por %p127, %p128
      %p130 = scmp.ne.s32.totalorder %s121, %s122
      %p131 = scmp.eq.s32.totalorder %s27, 0
      %p132 = por %p130, %p131
      %p133 = scmp.ne.s32.totalorder %s121, %s122
      %p134 = scmp.eq.s32.totalorder %s28, 1
      %p135 = por %p133, %p134
      %p137 = scmp.ne.s32.totalorder %s122, %s136
      %p138 = scmp.eq.s32.totalorder %s28, 0
      %p139 = por %p137, %p138
      %s141 = sadd.s32 %s140, 1
      %p144 = scmp.eq.s32.totalorder %s22, 1
      %p145 = scmp.ne.s32.totalorder %s140, %s142
      %p146 = scmp.eq.s32.totalorder %s22, 0
      %p147 = por %p145, %p146
      %p148 = scmp.ne.s32.totalorder %s140, %s142
      %p149 = scmp.eq.s32.totalorder %s27, 1
      %p150 = por %p148, %p149
      %p151 = scmp.ne.s32.totalorder %s142, %s143
      %p152 = scmp.eq.s32.totalorder %s27, 0
      %p153 = por %p151, %p152
      %p154 = scmp.ne.s32.totalorder %s142, %s143
      %p155 = scmp.eq.s32.totalorder %s28, 1
      %p156 = por %p154, %p155
      %p158 = scmp.ne.s32.totalorder %s143, %s157
      %p159 = scmp.eq.s32.totalorder %s28, 0
      %p160 = por %p158, %p159
      %s162 = sadd.s32 %s161, 1
      %p165 = scmp.eq.s32.totalorder %s22, 1
      %p166 = scmp.ne.s32.totalorder %s161, %s163
      %p167 = scmp.eq.s32.totalorder %s22, 0
      %p168 = por %p166, %p167
      %p169 = scmp.ne.s32.totalorder %s161, %s163
      %p170 = scmp.eq.s32.totalorder %s27, 1
      %p171 = por %p169, %p170
      %p172 = scmp.ne.s32.totalorder %s163, %s164
      %p173 = scmp.eq.s32.totalorder %s27, 0
      %p174 = por %p172, %p173
      %p175 = scmp.ne.s32.totalorder %s163, %s164
      %p176 = scmp.eq.s32.totalorder %s28, 1
      %p177 = por %p175, %p176
      %p179 = scmp.ne.s32.totalorder %s164, %s178
      %p180 = scmp.eq.s32.totalorder %s28, 0
      %p181 = por %p179, %p180
      %s183 = sadd.s32 %s182, 1
      %p186 = scmp.eq.s32.totalorder %s22, 1
      %p187 = scmp.ne.s32.totalorder %s182, %s184
      %p188 = scmp.eq.s32.totalorder %s22, 0
      %p189 = por %p187, %p188
      %p190 = scmp.ne.s32.totalorder %s182, %s184
      %p191 = scmp.eq.s32.totalorder %s27, 1
      %p192 = por %p190, %p191
      %p193 = scmp.ne.s32.totalorder %s184, %s185
      %p194 = scmp.eq.s32.totalorder %s27, 0
      %p195 = por %p193, %p194
      %p196 = scmp.ne.s32.totalorder %s184, %s185
      %p197 = scmp.eq.s32.totalorder %s28, 1
      %p198 = por %p196, %p197
      %p200 = scmp.ne.s32.totalorder %s185, %s199
      %p201 = scmp.eq.s32.totalorder %s28, 0
      %p202 = por %p200, %p201
      %s204 = sadd.s32 %s203, 1
      %p207 = scmp.eq.s32.totalorder %s22, 1
      %p208 = scmp.ne.s32.totalorder %s203, %s205
      %p209 = scmp.eq.s32.totalorder %s22, 0
      %p210 = por %p208, %p209
      %p211 = scmp.ne.s32.totalorder %s203, %s205
      %p212 = scmp.eq.s32.totalorder %s27, 1
      %p213 = por %p211, %p212
      %p214 = scmp.ne.s32.totalorder %s205, %s206
      %p215 = scmp.eq.s32.totalorder %s27, 0
      %p216 = por %p214, %p215
      %p217 = scmp.ne.s32.totalorder %s205, %s206
      %p218 = scmp.eq.s32.totalorder %s28, 1
      %p219 = por %p217, %p218
      %p221 = scmp.ne.s32.totalorder %s206, %s220
      %p222 = scmp.eq.s32.totalorder %s28, 0
      %p223 = por %p221, %p222
      %s225 = sadd.s32 %s224, 1
      %p228 = scmp.eq.s32.totalorder %s22, 1
      %p229 = scmp.ne.s32.totalorder %s224, %s226
      %p230 = scmp.eq.s32.totalorder %s22, 0
      %p231 = por %p229, %p230
      %p232 = scmp.ne.s32.totalorder %s224, %s226
      %p233 = scmp.eq.s32.totalorder %s27, 1
      %p234 = por %p232, %p233
      %p235 = scmp.ne.s32.totalorder %s226, %s227
      %p236 = scmp.eq.s32.totalorder %s27, 0
      %p237 = por %p235, %p236
      %p238 = scmp.ne.s32.totalorder %s226, %s227
      %p239 = scmp.eq.s32.totalorder %s28, 1
      %p240 = por %p238, %p239
      %p242 = scmp.ne.s32.totalorder %s227, %s241
      %p243 = scmp.eq.s32.totalorder %s28, 0
      %p244 = por %p242, %p243
      %s246 = sadd.s32 %s245, 1
      %p249 = scmp.eq.s32.totalorder %s22, 1
      %p250 = scmp.ne.s32.totalorder %s245, %s247
      %p251 = scmp.eq.s32.totalorder %s22, 0
      %p252 = por %p250, %p251
      %p253 = scmp.ne.s32.totalorder %s245, %s247
      %p254 = scmp.eq.s32.totalorder %s27, 1
      %p255 = por %p253, %p254
      %p256 = scmp.ne.s32.totalorder %s247, %s248
      %p257 = scmp.eq.s32.totalorder %s27, 0
      %p258 = por %p256, %p257
      %p259 = scmp.ne.s32.totalorder %s247, %s248
      %p260 = scmp.eq.s32.totalorder %s28, 1
      %p261 = por %p259, %p260
      %p263 = scmp.ne.s32.totalorder %s248, %s262
      %p264 = scmp.eq.s32.totalorder %s28, 0
      %p265 = por %p263, %p264
      %s266 = ssub.s32 %s22, %s29
      %p267 = scmp.eq.s32.totalorder %s266, 0
      %s269 = sadd.s32 %s268, 1
      %s270 = scalar_select %p267, %s268, %s269
      %p273 = pneg %p267
      %p274 = scmp.eq.s32.totalorder %s22, 1
      %p275 = por %p273, %p274
      %p276 = scmp.ne.s32.totalorder %s268, %s271
      %p277 = scmp.eq.s32.totalorder %s22, 0
      %p278 = por %p276, %p277
      %p279 = scmp.ne.s32.totalorder %s268, %s271
      %p280 = scmp.eq.s32.totalorder %s27, 1
      %p281 = por %p279, %p280
      %p282 = scmp.ne.s32.totalorder %s271, %s272
      %p283 = scmp.eq.s32.totalorder %s27, 0
      %p284 = por %p282, %p283
      %p285 = scmp.ne.s32.totalorder %s271, %s272
      %p286 = scmp.eq.s32.totalorder %s28, 1
      %p287 = por %p285, %p286
      %p289 = scmp.ne.s32.totalorder %s272, %s288
      %p290 = scmp.eq.s32.totalorder %s28, 0
      %p291 = por %p289, %p290
      %p292 = scmp.le.s32.totalorder 1, %s22
      %p293 = scmp.lt.s32.totalorder %s22, 3
      %p294 = pnand %p292, %p293
      %p295 = pneg %p294
      // Predicated region
      $region9: #{tpu_custom_call.1} parent=5 // pred_check
        _
      $region10: #{tpu_custom_call.1} parent=5 // pred_check_branch
        %297 = sbr.rel (%p294) target = $region12
      $region11: #{tpu_custom_call.1} parent=5 // pred_region
        %s298 = ssub.s32 %s22, 1
        // Predicated region
        $region13: #{tpu_custom_call.1} parent=11 // pred_check
          %p299 = pneg %p69
        $region14: #{tpu_custom_call.1} parent=11 // pred_check_branch
          %301 = sbr.rel (%p299) target = $region16
        $region15: #{tpu_custom_call.1} parent=11 // pred_region
          %s303 = ssub.s32 4992, 4992
          %304 = vsyncadd [#allocation3], %s303
          %s305 = sshll.u32 [#allocation2], 4
          %s306 = int_to_ptr.vmem [resolvable:$true] %s305
          %311 = dma.hbm_to_vmem [thread:$0]  %s1, 4992, %s306, [#allocation3], 128, 128, 8
        $region16: #{tpu_custom_call.1} parent=11 // pred_fallthru
          _
        // Predicated region
        $region17: #{tpu_custom_call.1} parent=11 // pred_check
          %p312 = pneg %p90
        $region18: #{tpu_custom_call.1} parent=11 // pred_check_branch
          %314 = sbr.rel (%p312) target = $region20
        $region19: #{tpu_custom_call.1} parent=11 // pred_region
          _
        $region20: #{tpu_custom_call.1} parent=11 // pred_fallthru
          _
        // Predicated region
        $region21: #{tpu_custom_call.1} parent=11 // pred_check
          %p315 = pneg %p111
        $region22: #{tpu_custom_call.1} parent=11 // pred_check_branch
          %317 = sbr.rel (%p315) target = $region24
        $region23: #{tpu_custom_call.1} parent=11 // pred_region
          %s319 = ssub.s32 2048, 2048
          %320 = vsyncadd [#allocation6], %s319
          %s321 = sshll.u32 [#allocation5], 4
          %s322 = int_to_ptr.vmem [resolvable:$true] %s321
          %327 = dma.hbm_to_vmem [thread:$0]  %s3, 2048, %s322, [#allocation6], 64, 64, 4
        $region24: #{tpu_custom_call.1} parent=11 // pred_fallthru
          _
        // Predicated region
        $region25: #{tpu_custom_call.1} parent=11 // pred_check
          %p328 = pneg %p132
        $region26: #{tpu_custom_call.1} parent=11 // pred_check_branch
          %330 = sbr.rel (%p328) target = $region28
        $region27: #{tpu_custom_call.1} parent=11 // pred_region
          _
        $region28: #{tpu_custom_call.1} parent=11 // pred_fallthru
          _
        // Predicated region
        $region29: #{tpu_custom_call.1} parent=11 // pred_check
          %p331 = pneg %p153
        $region30: #{tpu_custom_call.1} parent=11 // pred_check_branch
          %333 = sbr.rel (%p331) target = $region32
        $region31: #{tpu_custom_call.1} parent=11 // pred_region
          _
        $region32: #{tpu_custom_call.1} parent=11 // pred_fallthru
          _
        // Predicated region
        $region33: #{tpu_custom_call.1} parent=11 // pred_check
          %p334 = pneg %p174
        $region34: #{tpu_custom_call.1} parent=11 // pred_check_branch
          %336 = sbr.rel (%p334) target = $region36
        $region35: #{tpu_custom_call.1} parent=11 // pred_region
          _
        $region36: #{tpu_custom_call.1} parent=11 // pred_fallthru
          _
        // Predicated region
        $region37: #{tpu_custom_call.1} parent=11 // pred_check
          %p337 = pneg %p195
        $region38: #{tpu_custom_call.1} parent=11 // pred_check_branch
          %339 = sbr.rel (%p337) target = $region40
        $region39: #{tpu_custom_call.1} parent=11 // pred_region
          %s341 = ssub.s32 512, 512
          %342 = vsyncadd [#allocation6], %s341
          %s343 = sshll.u32 [#allocation7], 4
          %s344 = int_to_ptr.vmem [resolvable:$true] %s343
          %349 = dma.hbm_to_vmem [thread:$0]  %s7, 512, %s344, [#allocation6], 64, 64, 4
        $region40: #{tpu_custom_call.1} parent=11 // pred_fallthru
          _
        // Predicated region
        $region41: #{tpu_custom_call.1} parent=11 // pred_check
          %p350 = pneg %p216
        $region42: #{tpu_custom_call.1} parent=11 // pred_check_branch
          %352 = sbr.rel (%p350) target = $region44
        $region43: #{tpu_custom_call.1} parent=11 // pred_region
          _
        $region44: #{tpu_custom_call.1} parent=11 // pred_fallthru
          _
        // Predicated region
        $region45: #{tpu_custom_call.1} parent=11 // pred_check
          %p353 = pneg %p237
        $region46: #{tpu_custom_call.1} parent=11 // pred_check_branch
          %355 = sbr.rel (%p353) target = $region48
        $region47: #{tpu_custom_call.1} parent=11 // pred_region
          _
        $region48: #{tpu_custom_call.1} parent=11 // pred_fallthru
          _
        // Predicated region
        $region49: #{tpu_custom_call.1} parent=11 // pred_check
          %p356 = pneg %p258
        $region50: #{tpu_custom_call.1} parent=11 // pred_check_branch
          %358 = sbr.rel (%p356) target = $region52
        $region51: #{tpu_custom_call.1} parent=11 // pred_region
          _
        $region52: #{tpu_custom_call.1} parent=11 // pred_fallthru
          _
      $region12: #{tpu_custom_call.1} parent=5 // pred_fallthru
        _
      %p359 = scmp.lt.s32.totalorder %s22, 2
      // Predicated region
      $region53: #{tpu_custom_call.1} parent=5 // pred_check
        %p360 = pneg %p359
      $region54: #{tpu_custom_call.1} parent=5 // pred_check_branch
        %362 = sbr.rel (%p360) target = $region56
      $region55: #{tpu_custom_call.1} parent=5 // pred_region
        // Predicated region
        $region57: #{tpu_custom_call.1} parent=55 // pred_check
          %p363 = pneg %p42
        $region58: #{tpu_custom_call.1} parent=55 // pred_check_branch
          %365 = sbr.rel (%p363) target = $region60
        $region59: #{tpu_custom_call.1} parent=55 // pred_region
          %p366 = scmp.lt.s32.totalorder %s22, 1
          %s367 = scalar_select %p366, %s22, 1
          %s368 = smul.addr %s367, 3
          %s369 = smul.addr %s368, 8
          %s370 = scalar_lea.vmem %s0, %s369
        $region60: #{tpu_custom_call.1} parent=55 // pred_fallthru
          _
      $region56: #{tpu_custom_call.1} parent=5 // pred_fallthru
        _
      %p371 = scmp.le.s32.totalorder 1, %s22
      %p372 = scmp.lt.s32.totalorder %s22, 3
      %p373 = pnand %p371, %p372
      %p374 = pneg %p373
      // Predicated region
      $region61: #{tpu_custom_call.1} parent=5 // pred_check
        _
      $region62: #{tpu_custom_call.1} parent=5 // pred_check_branch
        %376 = sbr.rel (%p373) target = $region64
      $region63: #{tpu_custom_call.1} parent=5 // pred_region
        %s377 = ssub.s32 %s22, 1
        // Predicated region
        $region65: #{tpu_custom_call.1} parent=63 // pred_check
          %p378 = pneg %p69
        $region66: #{tpu_custom_call.1} parent=63 // pred_check_branch
          %380 = sbr.rel (%p378) target = $region68
        $region67: #{tpu_custom_call.1} parent=63 // pred_region
          %381 = dma.done [#allocation3], 4992
        $region68: #{tpu_custom_call.1} parent=63 // pred_fallthru
          _
        // Predicated region
        $region69: #{tpu_custom_call.1} parent=63 // pred_check
          %p382 = pneg %p111
        $region70: #{tpu_custom_call.1} parent=63 // pred_check_branch
          %384 = sbr.rel (%p382) target = $region72
        $region71: #{tpu_custom_call.1} parent=63 // pred_region
          %385 = dma.done [#allocation6], 2048
        $region72: #{tpu_custom_call.1} parent=63 // pred_fallthru
          _
        // Predicated region
        $region73: #{tpu_custom_call.1} parent=63 // pred_check
          %p386 = pneg %p195
        $region74: #{tpu_custom_call.1} parent=63 // pred_check_branch
          %388 = sbr.rel (%p386) target = $region76
        $region75: #{tpu_custom_call.1} parent=63 // pred_region
          %389 = dma.done [#allocation6], 512
        $region76: #{tpu_custom_call.1} parent=63 // pred_fallthru
          _
        %p390 = scmp.lt.s32.totalorder %s27, 1
        %s391 = scalar_select %p390, %s27, 1
        %s392 = smul.addr %s391, 3
        %s393 = smul.addr %s392, 8
        %s394 = scalar_lea.vmem %s0, %s393
        %p395 = pneg %p48
        %p396 = pneg %p45
        %p397 = pneg %p69
        %p398 = pneg %p66
        %p399 = pneg %p90
        %p400 = pneg %p87
        %p401 = pneg %p111
        %p402 = pneg %p108
        %p403 = pneg %p132
        %p404 = pneg %p129
        %p405 = pneg %p153
        %p406 = pneg %p150
        %p407 = pneg %p174
        %p408 = pneg %p171
        %p409 = pneg %p195
        %p410 = pneg %p192
        %p411 = pneg %p216
        %p412 = pneg %p213
        %p413 = pneg %p237
        %p414 = pneg %p234
        %p415 = pneg %p258
        %p416 = pneg %p255
        %p417 = pneg %p284
        %p418 = pneg %p281
        %s419 = sand.u32 %s271, 1
        %s420 = scalar_lea.sflag [#allocation4], %s419
        %s421 = sand.u32 %s271, 1
        %s422 = smul.addr %s421, 4
        %s423 = scalar_lea.vmem [#allocation8], %s422
        %p424 = scmp.lt.s32.totalorder %s27, 1
        %s425 = scalar_select %p424, %s27, 1
        %s426 = smul.addr %s425, 3
        %s427 = smul.addr %s426, 8
        %s428 = scalar_lea.vmem %s0, %s427
        %v430 = vld [vmem:[%s428] sm:$0xff]
        %v431 = vld [vmem:[%s428 + $0x8] sm:$0xff]
        %v432 = vld [vmem:[%s428 + $0x10] sm:$0xff]
        %v433 = vpack.c.bf16 %v430, %v430
        %v434 = vpack.c.bf16 %v431, %v431
        %v435 = vpack.c.bf16 %v432, %v432
        %v436 = vld [vmem:[#allocation2] sm:$0xff]
        %v437 = vld [vmem:[#allocation2 + $0x8] sm:$0xff]
        %v438 = vld [vmem:[#allocation2 + $0x10] sm:$0xff]
        %v439 = vld [vmem:[#allocation2 + $0x18] sm:$0xff]
        %v440 = vld [vmem:[#allocation2 + $0x20] sm:$0xff]
        %v441 = vld [vmem:[#allocation2 + $0x28] sm:$0xff]
        %v442 = vld [vmem:[#allocation2 + $0x30] sm:$0xff]
        %v443 = vld [vmem:[#allocation2 + $0x38] sm:$0xff]
        %v444 = vld [vmem:[#allocation2 + $0x40] sm:$0xff]
        %v445 = vld [vmem:[#allocation2 + $0x48] sm:$0xff]
        %v446 = vld [vmem:[#allocation2 + $0x50] sm:$0xff]
        %v447 = vld [vmem:[#allocation2 + $0x58] sm:$0xff]
        %v448 = vld [vmem:[#allocation2 + $0x60] sm:$0xff]
        %v449 = vld [vmem:[#allocation2 + $0x68] sm:$0xff]
        %v450 = vld [vmem:[#allocation2 + $0x70] sm:$0xff]
        %v451 = vld [vmem:[#allocation2 + $0x78] sm:$0xff]
        %v452 = vld [vmem:[#allocation2 + $0x80] sm:$0xff]
        %v453 = vld [vmem:[#allocation2 + $0x88] sm:$0xff]
        %v454 = vld [vmem:[#allocation2 + $0x90] sm:$0xff]
        %v455 = vld [vmem:[#allocation2 + $0x98] sm:$0xff]
        %v456 = vld [vmem:[#allocation2 + $0xa0] sm:$0xff]
        %v457 = vld [vmem:[#allocation2 + $0xa8] sm:$0xff]
        %v458 = vld [vmem:[#allocation2 + $0xb0] sm:$0xff]
        %v459 = vld [vmem:[#allocation2 + $0xb8] sm:$0xff]
        %v460 = vld [vmem:[#allocation2 + $0xc0] sm:$0xff]
        %v461 = vld [vmem:[#allocation2 + $0xc8] sm:$0xff]
        %v462 = vld [vmem:[#allocation2 + $0xd0] sm:$0xff]
        %v463 = vld [vmem:[#allocation2 + $0xd8] sm:$0xff]
        %v464 = vld [vmem:[#allocation2 + $0xe0] sm:$0xff]
        %v465 = vld [vmem:[#allocation2 + $0xe8] sm:$0xff]
        %v466 = vld [vmem:[#allocation2 + $0xf0] sm:$0xff]
        %v467 = vld [vmem:[#allocation2 + $0xf8] sm:$0xff]
        %v468 = vld [vmem:[#allocation2 + $0x100] sm:$0xff]
        %v469 = vld [vmem:[#allocation2 + $0x108] sm:$0xff]
        %v470 = vld [vmem:[#allocation2 + $0x110] sm:$0xff]
        %v471 = vld [vmem:[#allocation2 + $0x118] sm:$0xff]
        %v472 = vld [vmem:[#allocation2 + $0x120] sm:$0xff]
        %v473 = vld [vmem:[#allocation2 + $0x128] sm:$0xff]
        %v474 = vld [vmem:[#allocation2 + $0x130] sm:$0x77]
        %v475 = vld [vmem:[%s2] sm:$0x3]
        %v477 = vlaneseq
        %v478 = vshrl.u32 %v477, 7
        %v479 = vsub.s32 0, %v478
        %v480 = vrot.slane %v475, %v479
        %v481 = vlaneseq
        %v482 = vshrl.u32 %v481, 7
        %v483 = vsub.s32 1, %v482
        %v484 = vrot.slane %v475, %v483
        %v526 = vunpack.c.l.b16 %v436
        %v527 = vunpack.c.h.b16 %v436
        %v528 = vunpack.c.l.b16 %v437
        %v529 = vunpack.c.h.b16 %v437
        %v530 = vunpack.c.l.b16 %v438
        %v531 = vunpack.c.h.b16 %v438
        %v532 = vunpack.c.l.b16 %v439
        %v533 = vunpack.c.h.b16 %v439
        %v534 = vunpack.c.l.b16 %v440
        %v535 = vunpack.c.h.b16 %v440
        %v536 = vunpack.c.l.b16 %v441
        %v537 = vunpack.c.h.b16 %v441
        %v538 = vunpack.c.l.b16 %v442
        %v539 = vunpack.c.h.b16 %v442
        %v540 = vunpack.c.l.b16 %v443
        %v541 = vunpack.c.h.b16 %v443
        %v542 = vunpack.c.l.b16 %v444
        %v543 = vunpack.c.h.b16 %v444
        %v544 = vunpack.c.l.b16 %v445
        %v545 = vunpack.c.h.b16 %v445
        %v546 = vunpack.c.l.b16 %v446
        %v547 = vunpack.c.h.b16 %v446
        %v548 = vunpack.c.l.b16 %v447
        %v549 = vunpack.c.h.b16 %v447
        %v550 = vunpack.c.l.b16 %v448
        %v551 = vunpack.c.h.b16 %v448
        %v552 = vunpack.c.l.b16 %v449
        %v553 = vunpack.c.h.b16 %v449
        %v554 = vunpack.c.l.b16 %v450
        %v555 = vunpack.c.h.b16 %v450
        %v556 = vunpack.c.l.b16 %v451
        %v557 = vunpack.c.h.b16 %v451
        %v558 = vunpack.c.l.b16 %v452
        %v559 = vunpack.c.h.b16 %v452
        %v560 = vunpack.c.l.b16 %v453
        %v561 = vunpack.c.h.b16 %v453
        %v562 = vunpack.c.l.b16 %v454
        %v563 = vunpack.c.h.b16 %v454
        %v564 = vunpack.c.l.b16 %v455
        %v565 = vunpack.c.h.b16 %v455
        %v566 = vunpack.c.l.b16 %v456
        %v567 = vunpack.c.h.b16 %v456
        %v568 = vunpack.c.l.b16 %v457
        %v569 = vunpack.c.h.b16 %v457
        %v570 = vunpack.c.l.b16 %v458
        %v571 = vunpack.c.h.b16 %v458
        %v572 = vunpack.c.l.b16 %v459
        %v573 = vunpack.c.h.b16 %v459
        %v574 = vunpack.c.l.b16 %v460
        %v575 = vunpack.c.h.b16 %v460
        %v576 = vunpack.c.l.b16 %v461
        %v577 = vunpack.c.h.b16 %v461
        %v578 = vunpack.c.l.b16 %v462
        %v579 = vunpack.c.h.b16 %v462
        %v580 = vunpack.c.l.b16 %v463
        %v581 = vunpack.c.h.b16 %v463
        %v582 = vunpack.c.l.b16 %v464
        %v583 = vunpack.c.h.b16 %v464
        %v584 = vunpack.c.l.b16 %v465
        %v585 = vunpack.c.h.b16 %v465
        %v586 = vunpack.c.l.b16 %v466
        %v587 = vunpack.c.h.b16 %v466
        %v588 = vunpack.c.l.b16 %v467
        %v589 = vunpack.c.h.b16 %v467
        %v590 = vunpack.c.l.b16 %v468
        %v591 = vunpack.c.h.b16 %v468
        %v592 = vunpack.c.l.b16 %v469
        %v593 = vunpack.c.h.b16 %v469
        %v594 = vunpack.c.l.b16 %v470
        %v595 = vunpack.c.h.b16 %v470
        %v596 = vunpack.c.l.b16 %v471
        %v597 = vunpack.c.h.b16 %v471
        %v598 = vunpack.c.l.b16 %v472
        %v599 = vunpack.c.h.b16 %v472
        %v600 = vunpack.c.l.b16 %v473
        %v601 = vunpack.c.h.b16 %v473
        %v602 = vunpack.c.l.b16 %v474
        %v603 = vunpack.c.h.b16 %v474
        %v604 = vpack.c.b16 %v528, %v526
        %v605 = vpack.c.b16 %v529, %v527
        %v606 = vpack.c.b16 %v532, %v530
        %v607 = vpack.c.b16 %v533, %v531
        %v608 = vpack.c.b16 %v536, %v534
        %v609 = vpack.c.b16 %v537, %v535
        %v610 = vpack.c.b16 %v540, %v538
        %v611 = vpack.c.b16 %v541, %v539
        %v612 = vpack.c.b16 %v544, %v542
        %v613 = vpack.c.b16 %v545, %v543
        %v614 = vpack.c.b16 %v548, %v546
        %v615 = vpack.c.b16 %v549, %v547
        %v616 = vpack.c.b16 %v552, %v550
        %v617 = vpack.c.b16 %v553, %v551
        %v618 = vpack.c.b16 %v556, %v554
        %v619 = vpack.c.b16 %v557, %v555
        %v620 = vpack.c.b16 %v560, %v558
        %v621 = vpack.c.b16 %v561, %v559
        %v622 = vpack.c.b16 %v564, %v562
        %v623 = vpack.c.b16 %v565, %v563
        %v624 = vpack.c.b16 %v568, %v566
        %v625 = vpack.c.b16 %v569, %v567
        %v626 = vpack.c.b16 %v572, %v570
        %v627 = vpack.c.b16 %v573, %v571
        %v628 = vpack.c.b16 %v576, %v574
        %v629 = vpack.c.b16 %v577, %v575
        %v630 = vpack.c.b16 %v580, %v578
        %v631 = vpack.c.b16 %v581, %v579
        %v632 = vpack.c.b16 %v584, %v582
        %v633 = vpack.c.b16 %v585, %v583
        %v634 = vpack.c.b16 %v588, %v586
        %v635 = vpack.c.b16 %v589, %v587
        %v636 = vpack.c.b16 %v592, %v590
        %v637 = vpack.c.b16 %v593, %v591
        %v638 = vpack.c.b16 %v596, %v594
        %v639 = vpack.c.b16 %v597, %v595
        %v640 = vpack.c.b16 %v600, %v598
        %v641 = vpack.c.b16 %v601, %v599
        %v642 = vpack.c.b16 %v602, %v602
        %v643 = vpack.c.b16 %v603, %v603
        %vm682 = vcmask 441344
        %v684 = vsel %vm682, %v435, 0
        %vm686 = vcmask 1042432
        %v688 = vsel %vm686, %v642, 0
        %v691 = vsel %vm686, %v643, 0
        %693 = vmatprep.subr.bf16.mxu0 %v605
        %694 = vmatpush1.bf16.msra.mxu0 %v604
        %695 = vmatprep.subr.bf16.mxu0 %v607
        %696 = vmatpush1.bf16.msra.mxu0 %v606
        %697 = vmatprep.subr.bf16.mxu0 %v609
        %698 = vmatpush1.bf16.msra.mxu0 %v608
        %699 = vmatprep.subr.bf16.mxu0 %v611
        %700 = vmatpush1.bf16.msra.mxu0 %v610
        %701 = vmatprep.subr.bf16.mxu0 %v613
        %702 = vmatpush1.bf16.msra.mxu0 %v612
        %703 = vmatprep.subr.bf16.mxu0 %v615
        %704 = vmatpush1.bf16.msra.mxu0 %v614
        %705 = vmatprep.subr.bf16.mxu0 %v617
        %706 = vmatpush1.bf16.msra.mxu0 %v616
        %707 = vmatprep.subr.bf16.mxu0 %v619
        %708 = vmatpush1.bf16.msra.mxu0 %v618
        %709 = vmatprep.subr.bf16.mxu0 %v621
        %710 = vmatpush1.bf16.msra.mxu0 %v620
        %711 = vmatprep.subr.bf16.mxu0 %v623
        %712 = vmatpush1.bf16.msra.mxu0 %v622
        %713 = vmatprep.subr.bf16.mxu0 %v625
        %714 = vmatpush1.bf16.msra.mxu0 %v624
        %715 = vmatprep.subr.bf16.mxu0 %v627
        %716 = vmatpush1.bf16.msra.mxu0 %v626
        %717 = vmatprep.subr.bf16.mxu0 %v629
        %718 = vmatpush1.bf16.msra.mxu0 %v628
        %719 = vmatprep.subr.bf16.mxu0 %v631
        %720 = vmatpush1.bf16.msra.mxu0 %v630
        %721 = vmatprep.subr.bf16.mxu0 %v633
        %722 = vmatpush1.bf16.msra.mxu0 %v632
        %723 = vmatprep.subr.bf16.mxu0 %v635
        %724 = vmatpush1.bf16.msra.mxu0 %v634
        %725 = vmatprep.mubr.bf16.mxu0 %v434
        %726 = vmatmul.mubr.bf16.gmra.mrb[0].mxu0 %v433
        %v727 = vpop.f32.mrb[0].mxu0
        %v728 = vadd.f32 %v480, %v727
        %v729 = vpop.f32.mrb[0].mxu0
        %v730 = vadd.f32 %v484, %v729
        %v731 = vpop.f32.mrb[0].mxu0
        %v732 = vpop.f32.mrb[0].mxu0
        %733 = vdwg.mxu0
        %734 = vmatprep.subr.bf16.mxu0 %v637
        %735 = vmatpush1.bf16.msra.mxu0 %v636
        %736 = vmatprep.subr.bf16.mxu0 %v639
        %737 = vmatpush1.bf16.msra.mxu0 %v638
        %738 = vmatprep.subr.bf16.mxu0 %v641
        %739 = vmatpush1.bf16.msra.mxu0 %v640
        %740 = vmatprep.subr.bf16.mxu0 %v691
        %741 = vmatpush1.bf16.msra.mxu0 %v688
        %742 = vmatprep.subr.bf16.mxu0 0
        %743 = vmatpush1.bf16.msra.mxu0 0
        %744 = vmatprep.subr.bf16.mxu0 0
        %745 = vmatpush1.bf16.msra.mxu0 0
        %746 = vmatprep.subr.bf16.mxu0 0
        %747 = vmatpush1.bf16.msra.mxu0 0
        %748 = vmatprep.subr.bf16.mxu0 0
        %749 = vmatpush1.bf16.msra.mxu0 0
        %750 = vmatprep.subr.bf16.mxu0 0
        %751 = vmatpush1.bf16.msra.mxu0 0
        %752 = vmatprep.subr.bf16.mxu0 0
        %753 = vmatpush1.bf16.msra.mxu0 0
        %754 = vmatprep.subr.bf16.mxu0 0
        %755 = vmatpush1.bf16.msra.mxu0 0
        %756 = vmatprep.subr.bf16.mxu0 0
        %757 = vmatpush1.bf16.msra.mxu0 0
        %758 = vmatprep.subr.bf16.mxu0 0
        %759 = vmatpush1.bf16.msra.mxu0 0
        %760 = vmatprep.subr.bf16.mxu0 0
        %761 = vmatpush1.bf16.msra.mxu0 0
        %762 = vmatprep.subr.bf16.mxu0 0
        %763 = vmatpush1.bf16.msra.mxu0 0
        %764 = vmatprep.subr.bf16.mxu0 0
        %765 = vmatpush1.bf16.msra.mxu0 0
        %766 = vmatprep.mubr.bf16.mxu0 0
        %767 = vmatmul.mubr.bf16.gmra.mrb[0].mxu0 %v684
        %v768 = vpop.f32.mrb[0].mxu0
        %v769 = vadd.f32 %v728, %v768
        %v770 = vpop.f32.mrb[0].mxu0
        %v771 = vadd.f32 %v730, %v770
        %v772 = vpop.f32.mrb[0].mxu0
        %v773 = vpop.f32.mrb[0].mxu0
        %774 = vdwg.mxu0
        %v775 = vmul.f32 %v769, 0.01
        %v776 = vmul.f32 %v771, 0.01
        %v777 = vmax.f32 %v769, %v775
        %v778 = vmax.f32 %v771, %v776
        %v779 = vpack.c.bf16 %v777, %v777
        %v780 = vpack.c.bf16 %v778, %v778
        %v781 = vld [vmem:[#allocation5] sm:$0xf]
        %v782 = vld [vmem:[#allocation5 + $0x4] sm:$0xf]
        %v783 = vld [vmem:[#allocation5 + $0x8] sm:$0xf]
        %v784 = vld [vmem:[#allocation5 + $0xc] sm:$0xf]
        %v785 = vld [vmem:[#allocation5 + $0x10] sm:$0xf]
        %v786 = vld [vmem:[#allocation5 + $0x14] sm:$0xf]
        %v787 = vld [vmem:[#allocation5 + $0x18] sm:$0xf]
        %v788 = vld [vmem:[#allocation5 + $0x1c] sm:$0xf]
        %v789 = vld [vmem:[#allocation5 + $0x20] sm:$0xf]
        %v790 = vld [vmem:[#allocation5 + $0x24] sm:$0xf]
        %v791 = vld [vmem:[#allocation5 + $0x28] sm:$0xf]
        %v792 = vld [vmem:[#allocation5 + $0x2c] sm:$0xf]
        %v793 = vld [vmem:[#allocation5 + $0x30] sm:$0xf]
        %v794 = vld [vmem:[#allocation5 + $0x34] sm:$0xf]
        %v795 = vld [vmem:[#allocation5 + $0x38] sm:$0xf]
        %v796 = vld [vmem:[#allocation5 + $0x3c] sm:$0xf]
        %v797 = vld [vmem:[#allocation5 + $0x40] sm:$0xf]
        %v798 = vld [vmem:[#allocation5 + $0x44] sm:$0xf]
        %v799 = vld [vmem:[#allocation5 + $0x48] sm:$0xf]
        %v800 = vld [vmem:[#allocation5 + $0x4c] sm:$0xf]
        %v801 = vld [vmem:[#allocation5 + $0x50] sm:$0xf]
        %v802 = vld [vmem:[#allocation5 + $0x54] sm:$0xf]
        %v803 = vld [vmem:[#allocation5 + $0x58] sm:$0xf]
        %v804 = vld [vmem:[#allocation5 + $0x5c] sm:$0xf]
        %v805 = vld [vmem:[#allocation5 + $0x60] sm:$0xf]
        %v806 = vld [vmem:[#allocation5 + $0x64] sm:$0xf]
        %v807 = vld [vmem:[#allocation5 + $0x68] sm:$0xf]
        %v808 = vld [vmem:[#allocation5 + $0x6c] sm:$0xf]
        %v809 = vld [vmem:[#allocation5 + $0x70] sm:$0xf]
        %v810 = vld [vmem:[#allocation5 + $0x74] sm:$0xf]
        %v811 = vld [vmem:[#allocation5 + $0x78] sm:$0xf]
        %v812 = vld [vmem:[#allocation5 + $0x7c] sm:$0xf]
        %v813 = vld [vmem:[%s4] sm:$0x1]
        %v815 = vlaneseq
        %v816 = vshrl.u32 %v815, 7
        %v817 = vsub.s32 0, %v816
        %v818 = vrot.slane %v813, %v817
        %v852 = vunpack.c.l.b16 %v781
        %v853 = vunpack.c.l.b16 %v782
        %v854 = vunpack.c.l.b16 %v783
        %v855 = vunpack.c.l.b16 %v784
        %v856 = vunpack.c.l.b16 %v785
        %v857 = vunpack.c.l.b16 %v786
        %v858 = vunpack.c.l.b16 %v787
        %v859 = vunpack.c.l.b16 %v788
        %v860 = vunpack.c.l.b16 %v789
        %v861 = vunpack.c.l.b16 %v790
        %v862 = vunpack.c.l.b16 %v791
        %v863 = vunpack.c.l.b16 %v792
        %v864 = vunpack.c.l.b16 %v793
        %v865 = vunpack.c.l.b16 %v794
        %v866 = vunpack.c.l.b16 %v795
        %v867 = vunpack.c.l.b16 %v796
        %v868 = vunpack.c.l.b16 %v797
        %v869 = vunpack.c.l.b16 %v798
        %v870 = vunpack.c.l.b16 %v799
        %v871 = vunpack.c.l.b16 %v800
        %v872 = vunpack.c.l.b16 %v801
        %v873 = vunpack.c.l.b16 %v802
        %v874 = vunpack.c.l.b16 %v803
        %v875 = vunpack.c.l.b16 %v804
        %v876 = vunpack.c.l.b16 %v805
        %v877 = vunpack.c.l.b16 %v806
        %v878 = vunpack.c.l.b16 %v807
        %v879 = vunpack.c.l.b16 %v808
        %v880 = vunpack.c.l.b16 %v809
        %v881 = vunpack.c.l.b16 %v810
        %v882 = vunpack.c.l.b16 %v811
        %v883 = vunpack.c.l.b16 %v812
        %v884 = vpack.c.b16 %v853, %v852
        %v885 = vpack.c.b16 %v855, %v854
        %v886 = vpack.c.b16 %v857, %v856
        %v887 = vpack.c.b16 %v859, %v858
        %v888 = vpack.c.b16 %v861, %v860
        %v889 = vpack.c.b16 %v863, %v862
        %v890 = vpack.c.b16 %v865, %v864
        %v891 = vpack.c.b16 %v867, %v866
        %v892 = vpack.c.b16 %v869, %v868
        %v893 = vpack.c.b16 %v871, %v870
        %v894 = vpack.c.b16 %v873, %v872
        %v895 = vpack.c.b16 %v875, %v874
        %v896 = vpack.c.b16 %v877, %v876
        %v897 = vpack.c.b16 %v879, %v878
        %v898 = vpack.c.b16 %v881, %v880
        %v899 = vpack.c.b16 %v883, %v882
        %916 = vmatprep.subr.bf16.mxu0 0
        %917 = vmatpush1.bf16.msra.mxu0 %v884
        %918 = vmatprep.subr.bf16.mxu0 0
        %919 = vmatpush1.bf16.msra.mxu0 %v885
        %920 = vmatprep.subr.bf16.mxu0 0
        %921 = vmatpush1.bf16.msra.mxu0 %v886
        %922 = vmatprep.subr.bf16.mxu0 0
        %923 = vmatpush1.bf16.msra.mxu0 %v887
        %924 = vmatprep.subr.bf16.mxu0 0
        %925 = vmatpush1.bf16.msra.mxu0 %v888
        %926 = vmatprep.subr.bf16.mxu0 0
        %927 = vmatpush1.bf16.msra.mxu0 %v889
        %928 = vmatprep.subr.bf16.mxu0 0
        %929 = vmatpush1.bf16.msra.mxu0 %v890
        %930 = vmatprep.subr.bf16.mxu0 0
        %931 = vmatpush1.bf16.msra.mxu0 %v891
        %932 = vmatprep.subr.bf16.mxu0 0
        %933 = vmatpush1.bf16.msra.mxu0 %v892
        %934 = vmatprep.subr.bf16.mxu0 0
        %935 = vmatpush1.bf16.msra.mxu0 %v893
        %936 = vmatprep.subr.bf16.mxu0 0
        %937 = vmatpush1.bf16.msra.mxu0 %v894
        %938 = vmatprep.subr.bf16.mxu0 0
        %939 = vmatpush1.bf16.msra.mxu0 %v895
        %940 = vmatprep.subr.bf16.mxu0 0
        %941 = vmatpush1.bf16.msra.mxu0 %v896
        %942 = vmatprep.subr.bf16.mxu0 0
        %943 = vmatpush1.bf16.msra.mxu0 %v897
        %944 = vmatprep.subr.bf16.mxu0 0
        %945 = vmatpush1.bf16.msra.mxu0 %v898
        %946 = vmatprep.subr.bf16.mxu0 0
        %947 = vmatpush1.bf16.msra.mxu0 %v899
        %948 = vmatprep.mubr.bf16.mxu0 %v780
        %949 = vmatmul.mubr.bf16.gmra.mrb[0].mxu0 %v779
        %v950 = vpop.f32.mrb[0].mxu0
        %v951 = vadd.f32 %v818, %v950
        %v952 = vpop.f32.mrb[0].mxu0
        %v953 = vpop.f32.mrb[0].mxu0
        %v954 = vpop.f32.mrb[0].mxu0
        %955 = vdwg.mxu0
        %v956 = vmul.f32 %v951, 0.01
        %v957 = vmax.f32 %v951, %v956
        %v958 = vpack.c.bf16 %v957, %v957
        %v959 = vld [vmem:[%s5] sm:$0xf]
        %v960 = vld [vmem:[%s5 + $0x4] sm:$0xf]
        %v961 = vld [vmem:[%s5 + $0x8] sm:$0xf]
        %v962 = vld [vmem:[%s5 + $0xc] sm:$0xf]
        %v963 = vld [vmem:[%s5 + $0x10] sm:$0xf]
        %v964 = vld [vmem:[%s5 + $0x14] sm:$0xf]
        %v965 = vld [vmem:[%s5 + $0x18] sm:$0xf]
        %v966 = vld [vmem:[%s5 + $0x1c] sm:$0xf]
        %v967 = vld [vmem:[%s5 + $0x20] sm:$0xf]
        %v968 = vld [vmem:[%s5 + $0x24] sm:$0xf]
        %v969 = vld [vmem:[%s5 + $0x28] sm:$0xf]
        %v970 = vld [vmem:[%s5 + $0x2c] sm:$0xf]
        %v971 = vld [vmem:[%s5 + $0x30] sm:$0xf]
        %v972 = vld [vmem:[%s5 + $0x34] sm:$0xf]
        %v973 = vld [vmem:[%s5 + $0x38] sm:$0xf]
        %v974 = vld [vmem:[%s5 + $0x3c] sm:$0xf]
        %v975 = vld [vmem:[%s6] sm:$0x1]
        %v977 = vlaneseq
        %v978 = vshrl.u32 %v977, 7
        %v979 = vsub.s32 0, %v978
        %v980 = vrot.slane %v975, %v979
        %v998 = vunpack.c.l.b16 %v959
        %v999 = vunpack.c.l.b16 %v960
        %v1000 = vunpack.c.l.b16 %v961
        %v1001 = vunpack.c.l.b16 %v962
        %v1002 = vunpack.c.l.b16 %v963
        %v1003 = vunpack.c.l.b16 %v964
        %v1004 = vunpack.c.l.b16 %v965
        %v1005 = vunpack.c.l.b16 %v966
        %v1006 = vunpack.c.l.b16 %v967
        %v1007 = vunpack.c.l.b16 %v968
        %v1008 = vunpack.c.l.b16 %v969
        %v1009 = vunpack.c.l.b16 %v970
        %v1010 = vunpack.c.l.b16 %v971
        %v1011 = vunpack.c.l.b16 %v972
        %v1012 = vunpack.c.l.b16 %v973
        %v1013 = vunpack.c.l.b16 %v974
        %v1014 = vpack.c.b16 %v999, %v998
        %v1015 = vpack.c.b16 %v1001, %v1000
        %v1016 = vpack.c.b16 %v1003, %v1002
        %v1017 = vpack.c.b16 %v1005, %v1004
        %v1018 = vpack.c.b16 %v1007, %v1006
        %v1019 = vpack.c.b16 %v1009, %v1008
        %v1020 = vpack.c.b16 %v1011, %v1010
        %v1021 = vpack.c.b16 %v1013, %v1012
        %1030 = vmatprep.subr.bf16.mxu0 0
        %1031 = vmatpush1.bf16.msra.mxu0 %v1014
        %1032 = vmatprep.subr.bf16.mxu0 0
        %1033 = vmatpush1.bf16.msra.mxu0 %v1015
        %1034 = vmatprep.subr.bf16.mxu0 0
        %1035 = vmatpush1.bf16.msra.mxu0 %v1016
        %1036 = vmatprep.subr.bf16.mxu0 0
        %1037 = vmatpush1.bf16.msra.mxu0 %v1017
        %1038 = vmatprep.subr.bf16.mxu0 0
        %1039 = vmatpush1.bf16.msra.mxu0 %v1018
        %1040 = vmatprep.subr.bf16.mxu0 0
        %1041 = vmatpush1.bf16.msra.mxu0 %v1019
        %1042 = vmatprep.subr.bf16.mxu0 0
        %1043 = vmatpush1.bf16.msra.mxu0 %v1020
        %1044 = vmatprep.subr.bf16.mxu0 0
        %1045 = vmatpush1.bf16.msra.mxu0 %v1021
        %1046 = vmatprep.subr.bf16.mxu0 0
        %1047 = vmatpush1.bf16.msra.mxu0 0
        %1048 = vmatprep.subr.bf16.mxu0 0
        %1049 = vmatpush1.bf16.msra.mxu0 0
        %1050 = vmatprep.subr.bf16.mxu0 0
        %1051 = vmatpush1.bf16.msra.mxu0 0
        %1052 = vmatprep.subr.bf16.mxu0 0
        %1053 = vmatpush1.bf16.msra.mxu0 0
        %1054 = vmatprep.subr.bf16.mxu0 0
        %1055 = vmatpush1.bf16.msra.mxu0 0
        %1056 = vmatprep.subr.bf16.mxu0 0
        %1057 = vmatpush1.bf16.msra.mxu0 0
        %1058 = vmatprep.subr.bf16.mxu0 0
        %1059 = vmatpush1.bf16.msra.mxu0 0
        %1060 = vmatprep.subr.bf16.mxu0 0
        %1061 = vmatpush1.bf16.msra.mxu0 0
        %1062 = vmatprep.mubr.bf16.mxu0 0
        %1063 = vmatmul.mubr.bf16.gmra.mrb[0].mxu0 %v958
        %v1064 = vpop.f32.mrb[0].mxu0
        %v1065 = vadd.f32 %v980, %v1064
        %v1066 = vpop.f32.mrb[0].mxu0
        %v1067 = vpop.f32.mrb[0].mxu0
        %v1068 = vpop.f32.mrb[0].mxu0
        %1069 = vdwg.mxu0
        %v1070 = vmul.f32 %v1065, 0.01
        %v1071 = vmax.f32 %v1065, %v1070
        %v1072 = vpack.c.bf16 %v1071, %v1071
        %v1073 = vld [vmem:[#allocation7] sm:$0xf]
        %v1074 = vld [vmem:[#allocation7 + $0x4] sm:$0xf]
        %v1075 = vld [vmem:[#allocation7 + $0x8] sm:$0xf]
        %v1076 = vld [vmem:[#allocation7 + $0xc] sm:$0xf]
        %v1077 = vld [vmem:[#allocation7 + $0x10] sm:$0xf]
        %v1078 = vld [vmem:[#allocation7 + $0x14] sm:$0xf]
        %v1079 = vld [vmem:[#allocation7 + $0x18] sm:$0xf]
        %v1080 = vld [vmem:[#allocation7 + $0x1c] sm:$0xf]
        %v1081 = vld [vmem:[%s8] sm:$0x1]
        %v1083 = vlaneseq
        %v1084 = vshrl.u32 %v1083, 7
        %v1085 = vsub.s32 0, %v1084
        %v1086 = vrot.slane %v1081, %v1085
        %v1096 = vunpack.c.l.b16 %v1073
        %v1097 = vunpack.c.l.b16 %v1074
        %v1098 = vunpack.c.l.b16 %v1075
        %v1099 = vunpack.c.l.b16 %v1076
        %v1100 = vunpack.c.l.b16 %v1077
        %v1101 = vunpack.c.l.b16 %v1078
        %v1102 = vunpack.c.l.b16 %v1079
        %v1103 = vunpack.c.l.b16 %v1080
        %v1104 = vpack.c.b16 %v1097, %v1096
        %v1105 = vpack.c.b16 %v1099, %v1098
        %v1106 = vpack.c.b16 %v1101, %v1100
        %v1107 = vpack.c.b16 %v1103, %v1102
        %vm1112 = vcmask 523264
        %v1114 = vsel %vm1112, %v1072, 0
        %1116 = vmatprep.subr.bf16.mxu0 0
        %1117 = vmatpush1.bf16.msra.mxu0 %v1104
        %1118 = vmatprep.subr.bf16.mxu0 0
        %1119 = vmatpush1.bf16.msra.mxu0 %v1105
        %1120 = vmatprep.subr.bf16.mxu0 0
        %1121 = vmatpush1.bf16.msra.mxu0 %v1106
        %1122 = vmatprep.subr.bf16.mxu0 0
        %1123 = vmatpush1.bf16.msra.mxu0 %v1107
        %1124 = vmatprep.subr.bf16.mxu0 0
        %1125 = vmatpush1.bf16.msra.mxu0 0
        %1126 = vmatprep.subr.bf16.mxu0 0
        %1127 = vmatpush1.bf16.msra.mxu0 0
        %1128 = vmatprep.subr.bf16.mxu0 0
        %1129 = vmatpush1.bf16.msra.mxu0 0
        %1130 = vmatprep.subr.bf16.mxu0 0
        %1131 = vmatpush1.bf16.msra.mxu0 0
        %1132 = vmatprep.subr.bf16.mxu0 0
        %1133 = vmatpush1.bf16.msra.mxu0 0
        %1134 = vmatprep.subr.bf16.mxu0 0
        %1135 = vmatpush1.bf16.msra.mxu0 0
        %1136 = vmatprep.subr.bf16.mxu0 0
        %1137 = vmatpush1.bf16.msra.mxu0 0
        %1138 = vmatprep.subr.bf16.mxu0 0
        %1139 = vmatpush1.bf16.msra.mxu0 0
        %1140 = vmatprep.subr.bf16.mxu0 0
        %1141 = vmatpush1.bf16.msra.mxu0 0
        %1142 = vmatprep.subr.bf16.mxu0 0
        %1143 = vmatpush1.bf16.msra.mxu0 0
        %1144 = vmatprep.subr.bf16.mxu0 0
        %1145 = vmatpush1.bf16.msra.mxu0 0
        %1146 = vmatprep.subr.bf16.mxu0 0
        %1147 = vmatpush1.bf16.msra.mxu0 0
        %1148 = vmatprep.mubr.bf16.mxu0 0
        %1149 = vmatmul.mubr.bf16.gmra.mrb[0].mxu0 %v1114
        %v1150 = vpop.f32.mrb[0].mxu0
        %v1151 = vadd.f32 %v1086, %v1150
        %v1152 = vpop.f32.mrb[0].mxu0
        %v1153 = vpop.f32.mrb[0].mxu0
        %v1154 = vpop.f32.mrb[0].mxu0
        %1155 = vdwg.mxu0
        %v1156 = vmax.f32 %v1151, 0.0
        %v1157 = vpack.c.bf16 %v1156, %v1156
        %v1158 = vld [vmem:[%s9] sm:$0xf]
        %v1159 = vld [vmem:[%s9 + $0x4] sm:$0xf]
        %v1160 = vld [vmem:[%s9 + $0x8] sm:$0xf]
        %v1161 = vld [vmem:[%s9 + $0xc] sm:$0xf]
        %v1162 = vld [vmem:[%s9 + $0x10] sm:$0xf]
        %v1163 = vld [vmem:[%s9 + $0x14] sm:$0xf]
        %v1164 = vld [vmem:[%s9 + $0x18] sm:$0xf]
        %v1165 = vld [vmem:[%s9 + $0x1c] sm:$0xf]
        %v1166 = vld [vmem:[%s9 + $0x20] sm:$0xf]
        %v1167 = vld [vmem:[%s9 + $0x24] sm:$0xf]
        %v1168 = vld [vmem:[%s9 + $0x28] sm:$0xf]
        %v1169 = vld [vmem:[%s9 + $0x2c] sm:$0xf]
        %v1170 = vld [vmem:[%s10] sm:$0x1]
        %v1172 = vlaneseq
        %v1173 = vshrl.u32 %v1172, 7
        %v1174 = vsub.s32 0, %v1173
        %v1175 = vrot.slane %v1170, %v1174
        %v1189 = vunpack.c.l.b16 %v1158
        %v1190 = vunpack.c.l.b16 %v1159
        %v1191 = vunpack.c.l.b16 %v1160
        %v1192 = vunpack.c.l.b16 %v1161
        %v1193 = vunpack.c.l.b16 %v1162
        %v1194 = vunpack.c.l.b16 %v1163
        %v1195 = vunpack.c.l.b16 %v1164
        %v1196 = vunpack.c.l.b16 %v1165
        %v1197 = vunpack.c.l.b16 %v1166
        %v1198 = vunpack.c.l.b16 %v1167
        %v1199 = vunpack.c.l.b16 %v1168
        %v1200 = vunpack.c.l.b16 %v1169
        %v1201 = vpack.c.b16 %v1190, %v1189
        %v1202 = vpack.c.b16 %v1192, %v1191
        %v1203 = vpack.c.b16 %v1194, %v1193
        %v1204 = vpack.c.b16 %v1196, %v1195
        %v1205 = vpack.c.b16 %v1198, %v1197
        %v1206 = vpack.c.b16 %v1200, %v1199
        %vm1213 = vcmask 785408
        %v1215 = vsel %vm1213, %v1157, 0
        %1217 = vmatprep.subr.bf16.mxu0 0
        %1218 = vmatpush1.bf16.msra.mxu0 %v1201
        %1219 = vmatprep.subr.bf16.mxu0 0
        %1220 = vmatpush1.bf16.msra.mxu0 %v1202
        %1221 = vmatprep.subr.bf16.mxu0 0
        %1222 = vmatpush1.bf16.msra.mxu0 %v1203
        %1223 = vmatprep.subr.bf16.mxu0 0
        %1224 = vmatpush1.bf16.msra.mxu0 %v1204
        %1225 = vmatprep.subr.bf16.mxu0 0
        %1226 = vmatpush1.bf16.msra.mxu0 %v1205
        %1227 = vmatprep.subr.bf16.mxu0 0
        %1228 = vmatpush1.bf16.msra.mxu0 %v1206
        %1229 = vmatprep.subr.bf16.mxu0 0
        %1230 = vmatpush1.bf16.msra.mxu0 0
        %1231 = vmatprep.subr.bf16.mxu0 0
        %1232 = vmatpush1.bf16.msra.mxu0 0
        %1233 = vmatprep.subr.bf16.mxu0 0
        %1234 = vmatpush1.bf16.msra.mxu0 0
        %1235 = vmatprep.subr.bf16.mxu0 0
        %1236 = vmatpush1.bf16.msra.mxu0 0
        %1237 = vmatprep.subr.bf16.mxu0 0
        %1238 = vmatpush1.bf16.msra.mxu0 0
        %1239 = vmatprep.subr.bf16.mxu0 0
        %1240 = vmatpush1.bf16.msra.mxu0 0
        %1241 = vmatprep.subr.bf16.mxu0 0
        %1242 = vmatpush1.bf16.msra.mxu0 0
        %1243 = vmatprep.subr.bf16.mxu0 0
        %1244 = vmatpush1.bf16.msra.mxu0 0
        %1245 = vmatprep.subr.bf16.mxu0 0
        %1246 = vmatpush1.bf16.msra.mxu0 0
        %1247 = vmatprep.subr.bf16.mxu0 0
        %1248 = vmatpush1.bf16.msra.mxu0 0
        %1249 = vmatprep.mubr.bf16.mxu0 0
        %1250 = vmatmul.mubr.bf16.gmra.mrb[0].mxu0 %v1215
        %v1251 = vpop.f32.mrb[0].mxu0
        %v1252 = vadd.f32 %v1175, %v1251
        %v1253 = vpop.f32.mrb[0].mxu0
        %v1254 = vpop.f32.mrb[0].mxu0
        %v1255 = vpop.f32.mrb[0].mxu0
        %1256 = vdwg.mxu0
        %v1257 = vpack.c.bf16 %v1252, %v1252
        %1258 = vst [vmem:[%s423] sm:$0xf] %v1257
        %s1259 = sand.u32 %s271, 1
        %s1260 = scalar_lea.sflag [#allocation4], %s1259
        %s1261 = sand.u32 %s271, 1
        %s1262 = smul.addr %s1261, 4
        %s1263 = scalar_lea.vmem [#allocation8], %s1262
        // Predicated region
        $region77: #{tpu_custom_call.1} parent=63 // pred_check
          %p1264 = pneg %p281
        $region78: #{tpu_custom_call.1} parent=63 // pred_check_branch
          %1266 = sbr.rel (%p1264) target = $region80
        $region79: #{tpu_custom_call.1} parent=63 // pred_region
          %s1268 = ssub.s32 64, 64
          %1269 = vsyncadd %s1260, %s1268
          %s1270 = smul.addr %s27, 64
          %s1271 = scalar_lea.hbm %s11, %s1270
          %s1273 = sshll.u32 %s1263, 4
          %s1274 = int_to_ptr.vmem [resolvable:$true] %s1273
          %1276 = dma.vmem_to_hbm [thread:$0]  %s1274, 64, %s1271, %s1260
        $region80: #{tpu_custom_call.1} parent=63 // pred_fallthru
          _
      $region64: #{tpu_custom_call.1} parent=5 // pred_fallthru
        _
      %p1277 = scmp.le.s32.totalorder 2, %s22
      // Predicated region
      $region81: #{tpu_custom_call.1} parent=5 // pred_check
        %p1278 = pneg %p1277
      $region82: #{tpu_custom_call.1} parent=5 // pred_check_branch
        %1280 = sbr.rel (%p1278) target = $region84
      $region83: #{tpu_custom_call.1} parent=5 // pred_region
        %s1281 = ssub.s32 %s22, 2
        // Predicated region
        $region85: #{tpu_custom_call.1} parent=83 // pred_check
          %p1282 = pneg %p287
        $region86: #{tpu_custom_call.1} parent=83 // pred_check_branch
          %1284 = sbr.rel (%p1282) target = $region88
        $region87: #{tpu_custom_call.1} parent=83 // pred_region
          %s1285 = sand.u32 %s272, 1
          %s1286 = scalar_lea.sflag [#allocation4], %s1285
          %s1287 = sand.u32 %s272, 1
          %s1288 = smul.addr %s1287, 4
          %s1289 = scalar_lea.vmem [#allocation8], %s1288
          %1290 = dma.done %s1286, 64
        $region88: #{tpu_custom_call.1} parent=83 // pred_fallthru
          _
      $region84: #{tpu_custom_call.1} parent=5 // pred_fallthru
        _
    $region6: #{tpu_custom_call.1} parent=1 // loop_footer
      %s26 = sadd.s32 1, %s22
    $region7: #{tpu_custom_call.1} parent=1 // loop_footer_branch
      %21 = sbr.rel target = $region3
    $region8: #{tpu_custom_call.1} parent=1 // loop_exit
      _
    %1291 = vsyncpa [#allocation3], 1
    %s1292 = scalar_lea.sflag [#allocation3], 1
    %1293 = vsyncpa %s1292, 1
    %1294 = vsyncpa [#allocation6], 1
    %1295 = vsyncpa [#allocation4], 1
    %s1296 = scalar_lea.sflag [#allocation4], 1
    %1297 = vsyncpa %s1296, 1

</llo_original>
